<compile_context>
chip_gen: v6e
topology: v6e:2x2x1
jax: 0.10.0
libtpu: 0.0.40
codegen_flags: <defaults>
</compile_context>

<pallas_src>
import functools

import jax
import jax.numpy as jnp
from jax.experimental import pallas as pl
from jax.experimental.pallas import tpu as pltpu


def _ipow(x, n):
    """x ** n for a non-negative Python int n via repeated multiplies (no EUP)."""
    if n == 0:
        return jnp.ones_like(x)
    result = None
    base = x
    while n:
        if n & 1:
            result = base if result is None else result * base
        n >>= 1
        if n:
            base = base * base
    return result


def _pow_const(x, g):
    """x ** g for a statically-known exponent, specialized for small integers."""
    gf = float(g)
    if gf == 0.0:
        return jnp.ones_like(x)
    if gf == 1.0:
        return x
    if gf.is_integer() and 0.0 < gf <= 64.0:
        return _ipow(x, int(gf))
    return jnp.power(x, gf)   # fallback: non-integer exponent -> exp/log on EUP


def _make_kernel(eta, gamma_pos, gamma_neg, gamma_hc, eps, num_classes,
                 ignore_index, hw, t_pix, tiles_per_split, weight_dtype):
    eta = float(eta)
    gamma_pos = float(gamma_pos)
    gamma_neg = float(gamma_neg)
    gamma_hc = float(gamma_hc)
    eps = float(eps)
    c = int(num_classes)
    needs_lane_mask = (hw % t_pix) != 0
    wd = weight_dtype

    def kernel(x_ref, t_ref, sum_out_ref, cnt_out_ref, acc_ref, cnt_ref):
        p = pl.program_id(2)

        @pl.when(p == 0)
        def _():
            acc_ref[...] = jnp.zeros_like(acc_ref)
            cnt_ref[...] = jnp.zeros_like(cnt_ref)

        x = x_ref[0].astype(jnp.float32)      # (C, T): classes on sublanes, pixels on lanes
        t = t_ref[0]                          # (1, T) int32

        if ignore_index is None:
            valid = jnp.ones((1, t_pix), dtype=jnp.bool_)
        else:
            valid = t != ignore_index         # (1, T)

        if needs_lane_mask:
            # Partial final pixel tile: mask out-of-bounds lanes and zero their
            # (possibly garbage / NaN) logits so they cannot poison the accumulator.
            tile_idx = pl.program_id(1) * tiles_per_split + p
            lane = jax.lax.broadcasted_iota(jnp.int32, (1, t_pix), 1)
            in_bounds = (tile_idx * t_pix + lane) < hw
            valid = jnp.logical_and(valid, in_bounds)
            x = jnp.where(in_bounds, x, 0.0)
        maskf = valid.astype(jnp.float32)

        # log-softmax over classes (sublane axis); reuse exp(z) for the probabilities
        m = jnp.max(x, axis=0, keepdims=True)            # (1, T)  XLU
        z = x - m                                        # (C, T)
        ez = jnp.exp(z)                                  # (C, T)  EUP
        ssum = jnp.sum(ez, axis=0, keepdims=True)        # (1, T)  XLU
        log_preds = z - jnp.log(ssum)                    # (C, T)

        # Target-class log-prob / prob via one masked sublane reduction.
        # Ignored pixels (t == ignore_index) match no row -> lp_t = 0, p_t = 1;
        # everything stays finite and is killed by maskf below.
        row = jax.lax.broadcasted_iota(jnp.int32, (c, t_pix), 0)
        onehot_t = row == t                              # (C, T) bool
        lp_t = jnp.sum(jnp.where(onehot_t, log_preds, 0.0), axis=0, keepdims=True)
        p_t = jnp.exp(lp_t)                              # (1, T), <= 1 by construction

        # Negative-branch weight applied to EVERY class element; the target
        # class is corrected with (1, T) math afterwards.
        if gamma_neg == 0.0:
            S = jnp.sum(log_preds, axis=0, keepdims=True)
            w_neg_t = 1.0
        else:
            probs = ez * pl.reciprocal(ssum, approx=True)        # (C, T)
            asym = _pow_const(probs.astype(wd), gamma_neg)       # p^gamma_neg
            w_neg = asym * (1.0 - eta) + eta                     # (C, T)
            lpw = log_preds.astype(wd) * w_neg                   # (C, T)
            S = jnp.sum(lpw, axis=0, keepdims=True).astype(jnp.float32)
            w_neg_t = (1.0 - eta) * _pow_const(p_t, gamma_neg) + eta   # (1, T)

        # Target-class (positive-branch) weight, all (1, T) shaped.
        asym_t = 1.0 if gamma_pos == 0.0 else _pow_const(1.0 - p_t, gamma_pos)
        pos_t = 1.0 if gamma_hc == 0.0 else _pow_const(1.0 + p_t, gamma_hc)
        w_pos_t = (1.0 - eta) * asym_t + eta * pos_t

        if eps > 0:
            off = eps / c
            on = 1.0 - eps + off
            tot = off * (S - lp_t * w_neg_t) + on * (lp_t * w_pos_t)
        else:
            tot = lp_t * w_pos_t
        pix_loss = -tot                                   # (1, T)

        acc_ref[...] = acc_ref[...] + pix_loss * maskf
        cnt_ref[...] = cnt_ref[...] + maskf

        @pl.when(p == pl.num_programs(2) - 1)
        def _():
            sum_out_ref[...] = jnp.broadcast_to(jnp.sum(acc_ref[...]), (1, 1, 1))
            cnt_out_ref[...] = jnp.broadcast_to(jnp.sum(cnt_ref[...]), (1, 1, 1))

    return kernel


def _choose_t_pix(hw, num_classes, itemsize):
    """Largest lane tile (multiple of 128) whose PADDED VMEM footprint ~24 MiB."""
    itemsize = int(itemsize)
    sub_in = {1: 32, 2: 16, 4: 8}.get(itemsize, 8)
    padded_c_in = max(sub_in, ((num_classes + sub_in - 1) // sub_in) * sub_in)
    padded_c_f32 = max(8, ((num_classes + 7) // 8) * 8)
    per_lane = (2 * padded_c_in * itemsize   # double-buffered logits input block
                + 2 * 8 * 4                  # double-buffered int32 target block (1 sublane pads to 8)
                + 2 * 8 * 4                  # two (1, T) f32 scratch accumulators (pad to 8 sublanes)
                + 8 * padded_c_f32 * 4)      # ~8 live (C, T) f32 temps inside the body
    budget = 24 * 1024 * 1024
    t = budget // per_lane
    t = max(512, min(int(t), 65536))
    t = (t // 128) * 128
    if t >= hw:
        return hw          # single tile spanning the whole spatial extent (always legal)
    return t


@functools.partial(
    jax.jit,
    static_argnames=("epoch", "gamma_pos", "gamma_neg", "gamma_hc", "eps",
                     "epochs", "factor", "ignore_index", "t_pix", "weight_dtype"),
)
def cyclical_focal_loss(inputs, target, epoch, *, gamma_pos=0, gamma_neg=4,
                        gamma_hc=0, eps=0.1, epochs=200, factor=2,
                        ignore_index=-1, t_pix=None, weight_dtype=jnp.float32):
    """inputs: (N, C, H, W) logits (any float dtype); target: (N, H, W) int class ids."""
    n, c, h, w = inputs.shape
    hw = h * w

    # Pixels-on-lanes layout: free view of NCHW — no transpose, no pad, no
    # wrapper-side f32 upcast (the kernel casts tiles to f32 in VMEM).
    x = inputs.reshape(n, c, hw)
    t = target.reshape(n, 1, hw)
    if t.dtype != jnp.int32:
        t = t.astype(jnp.int32)

    if t_pix is None:
        t_pix = _choose_t_pix(hw, c, jnp.dtype(inputs.dtype).itemsize)
    num_tiles = pl.cdiv(hw, t_pix)

    # Split the pixel-tile axis into a second 'parallel' axis (v7x has 2 TCs;
    # batch alone leaves a core idle for N == 1 / odd N). Only split when it
    # divides evenly so no grid padding / block clamping is needed.
    n_splits = 2 if (num_tiles >= 2 and num_tiles % 2 == 0) else 1
    tiles_per_split = num_tiles // n_splits

    # eta schedule (scalar, host side; epoch is static)
    if factor * epoch < epochs:
        eta = 1.0 - factor * epoch / (epochs - 1)
    else:
        eta = (factor * epoch / (epochs - 1) - 1.0) / (factor - 1.0)

    kernel = _make_kernel(eta, gamma_pos, gamma_neg, gamma_hc, eps, c,
                          ignore_index, hw, t_pix, tiles_per_split, weight_dtype)

    logit_bytes = n * c * hw * jnp.dtype(inputs.dtype).itemsize
    cost = pl.CostEstimate(
        flops=int(12 * n * c * hw),
        transcendentals=int(n * c * hw + 2 * n * hw),
        bytes_accessed=int(logit_bytes + n * hw * 4 + 2 * n * n_splits * 4),
    )

    sums, cnts = pl.pallas_call(
        kernel,
        out_shape=(jax.ShapeDtypeStruct((n * n_splits, 1, 1), jnp.float32),
                   jax.ShapeDtypeStruct((n * n_splits, 1, 1), jnp.float32)),
        grid_spec=pltpu.PrefetchScalarGridSpec(
            num_scalar_prefetch=0,
            grid=(n, n_splits, tiles_per_split),
            in_specs=[
                pl.BlockSpec((1, c, t_pix),
                             lambda b, s, p: (b, 0, s * tiles_per_split + p)),
                pl.BlockSpec((1, 1, t_pix),
                             lambda b, s, p: (b, 0, s * tiles_per_split + p)),
            ],
            out_specs=[
                pl.BlockSpec((1, 1, 1), lambda b, s, p: (b * n_splits + s, 0, 0)),
                pl.BlockSpec((1, 1, 1), lambda b, s, p: (b * n_splits + s, 0, 0)),
            ],
            scratch_shapes=[
                pltpu.VMEM((1, t_pix), jnp.float32),   # lane-wise masked loss partial
                pltpu.VMEM((1, t_pix), jnp.float32),   # lane-wise valid-pixel count
            ],
        ),
        compiler_params=pltpu.CompilerParams(
            # batch/split axes carry no cross-iteration state -> parallel;
            # the pixel-tile axis carries the accumulator -> arbitrary.
            dimension_semantics=("parallel", "parallel", "arbitrary"),
            vmem_limit_bytes=48 * 1024 * 1024,
        ),
        cost_estimate=cost,
    )(x, t)

    # Tiny final reduction over the per-(batch, split) partials, kept outside
    # the kernel so those axes stay 'parallel'.  Matches reference: all-ignored
    # input yields 0/0 = NaN, same as torch .mean() over an empty selection.
    return jnp.sum(sums) / jnp.sum(cnts)


def _reference_jax(inputs, target, epoch, *, gamma_pos=0, gamma_neg=4, gamma_hc=0,
                   eps=0.1, epochs=200, factor=2, ignore_index=-1):
    n, c, h, w = inputs.shape
    x = jnp.transpose(inputs, (0, 2, 3, 1)).reshape(-1, c).astype(jnp.float32)
    t = target.reshape(-1).astype(jnp.int32)
    valid = t != ignore_index
    t_safe = jnp.where(valid, t, 0)
    logp = jax.nn.log_softmax(x, axis=-1)
    onehot = jax.nn.one_hot(t_safe, c, dtype=jnp.float32)
    anti = 1.0 - onehot
    if factor * epoch < epochs:
        eta = 1.0 - factor * epoch / (epochs - 1)
    else:
        eta = (factor * epoch / (epochs - 1) - 1.0) / (factor - 1.0)
    p = jnp.exp(logp)
    xs_pos = p * onehot
    xs_neg = (1.0 - p) * anti
    asym = jnp.power(1.0 - xs_pos - xs_neg, gamma_pos * onehot + gamma_neg * anti)
    posw = jnp.power(1.0 + xs_pos, gamma_hc * onehot)
    logp_w = logp * ((1.0 - eta) * asym + eta * posw)
    tc = onehot * (1.0 - eps) + eps / c if eps > 0 else onehot
    row = -jnp.sum(tc * logp_w, axis=-1)
    mf = valid.astype(jnp.float32)
    return jnp.sum(row * mf) / jnp.sum(mf)


if __name__ == "__main__":
    key = jax.random.PRNGKey(0)
    k1, k2, k3 = jax.random.split(key, 3)

    N, C, H, W = 2, 4, 16, 16
    inputs = jax.random.normal(k1, (N, C, H, W), dtype=jnp.float32)
    target = jax.random.randint(k2, (N, H, W), 0, C, dtype=jnp.int32)
    # sprinkle some ignore_index pixels to exercise masking
    ignore_mask = jax.random.bernoulli(k3, 0.1, (N, H, W))
    target = jnp.where(ignore_mask, -1, target)
    epoch = 30

    loss = cyclical_focal_loss(inputs, target, epoch)
    loss = jax.block_until_ready(loss)

    ref = _reference_jax(inputs, target, epoch)
    assert jnp.allclose(loss, ref, atol=1e-4, rtol=1e-4), (loss, ref)

    print("KERNEL_OK")
</pallas_src>

<mosaic_0001>
module attributes {stable_mosaic.version = 11 : i64} {
  func.func @kernel(%arg0: i32, %arg1: i32, %arg2: i32, %arg3: memref<1x4x256xf32, #tpu.memory_space<vmem>>, %arg4: memref<1x1x256xi32, #tpu.memory_space<vmem>>, %arg5: memref<1x1x1xf32, #tpu.memory_space<vmem>>, %arg6: memref<1x1x1xf32, #tpu.memory_space<vmem>>, %arg7: memref<1x256xf32, #tpu.memory_space<vmem>>, %arg8: memref<1x256xf32, #tpu.memory_space<vmem>>) attributes {dimension_semantics = [#tpu.dimension_semantics<parallel>, #tpu.dimension_semantics<parallel>, #tpu.dimension_semantics<arbitrary>], iteration_bounds = array<i64: 2, 1, 1>, scalar_prefetch = 0 : i64, scratch_operands = 2 : i64, tpu.core_type = #tpu.core_type<tc>, window_params = [{transform_indices = @transform_0, window_bounds = array<i64: 1, 4, 256>}, {transform_indices = @transform_1, window_bounds = array<i64: 1, 1, 256>}, {transform_indices = @transform_2, window_bounds = array<i64: 1, 1, 1>}, {transform_indices = @transform_3, window_bounds = array<i64: 1, 1, 1>}]} {
    %c0_i32 = arith.constant 0 : i32
    %0 = arith.cmpi eq, %arg2, %c0_i32 : i32
    %1 = arith.extui %0 : i1 to i32
    %c0_i32_0 = arith.constant 0 : i32
    %2 = arith.cmpi ne, %1, %c0_i32_0 : i32
    scf.if %2 {
      %cst_28 = arith.constant 0.000000e+00 : f32
      %68 = vector.broadcast %cst_28 : f32 to vector<1x256xf32>
      %c0_29 = arith.constant 0 : index
      %c0_30 = arith.constant 0 : index
      %69 = vector.load %arg7[%c0_29, %c0_30] : memref<1x256xf32, #tpu.memory_space<vmem>>, vector<1x256xf32>
      tpu.vector_store %arg7[%c0_29, %c0_30], %68 {strides = array<i32>} : memref<1x256xf32, #tpu.memory_space<vmem>>, vector<1x256xf32>,
      %cst_31 = arith.constant 0.000000e+00 : f32
      %70 = vector.broadcast %cst_31 : f32 to vector<1x256xf32>
      %c0_32 = arith.constant 0 : index
      %c0_33 = arith.constant 0 : index
      %71 = vector.load %arg8[%c0_32, %c0_33] : memref<1x256xf32, #tpu.memory_space<vmem>>, vector<1x256xf32>
      tpu.vector_store %arg8[%c0_32, %c0_33], %70 {strides = array<i32>} : memref<1x256xf32, #tpu.memory_space<vmem>>, vector<1x256xf32>,
    } else {
    }
    %c0 = arith.constant 0 : index
    %c0_1 = arith.constant 0 : index
    %c0_2 = arith.constant 0 : index
    %3 = vector.load %arg3[%c0, %c0_1, %c0_2] : memref<1x4x256xf32, #tpu.memory_space<vmem>>, vector<1x4x256xf32>
    %4 = vector.shape_cast %3 : vector<1x4x256xf32> to vector<4x256xf32>
    %c0_3 = arith.constant 0 : index
    %c0_4 = arith.constant 0 : index
    %c0_5 = arith.constant 0 : index
    %5 = vector.load %arg4[%c0_3, %c0_4, %c0_5] : memref<1x1x256xi32, #tpu.memory_space<vmem>>, vector<1x1x256xi32>
    %6 = vector.shape_cast %5 : vector<1x1x256xi32> to vector<1x256xi32>
    %c-1_i32 = arith.constant -1 : i32
    %7 = vector.broadcast %c-1_i32 : i32 to vector<1x256xi32>
    %8 = arith.cmpi ne, %6, %7 : vector<1x256xi32>
    %9 = arith.extui %8 : vector<1x256xi1> to vector<1x256xi32>
    %10 = arith.sitofp %9 : vector<1x256xi32> to vector<1x256xf32>
    %cst = arith.constant dense<0xFF800000> : vector<256xf32>
    %11 = vector.multi_reduction <maximumf>, %4, %cst [0] : vector<4x256xf32> to vector<256xf32>
    %12 = vector.shape_cast %11 : vector<256xf32> to vector<1x256xf32>
    %13 = vector.broadcast %12 : vector<1x256xf32> to vector<4x256xf32>
    %14 = arith.subf %4, %13 : vector<4x256xf32>
    %15 = math.exp %14 : vector<4x256xf32>
    %cst_6 = arith.constant dense<0.000000e+00> : vector<256xf32>
    %16 = vector.multi_reduction <add>, %15, %cst_6 [0] : vector<4x256xf32> to vector<256xf32>
    %17 = vector.shape_cast %16 : vector<256xf32> to vector<1x256xf32>
    %18 = math.log %17 : vector<1x256xf32>
    %19 = vector.broadcast %18 : vector<1x256xf32> to vector<4x256xf32>
    %20 = arith.subf %14, %19 : vector<4x256xf32>
    %21 = tpu.iota {dimensions = array<i32: 0>} : vector<4x256xi32>
    %22 = vector.broadcast %6 : vector<1x256xi32> to vector<4x256xi32>
    %23 = arith.cmpi eq, %21, %22 : vector<4x256xi32>
    %cst_7 = arith.constant 0.000000e+00 : f32
    %24 = vector.broadcast %cst_7 : f32 to vector<4x256xf32>
    %25 = arith.select %23, %20, %24 : vector<4x256xi1>, vector<4x256xf32>
    %cst_8 = arith.constant dense<0.000000e+00> : vector<256xf32>
    %26 = vector.multi_reduction <add>, %25, %cst_8 [0] : vector<4x256xf32> to vector<256xf32>
    %27 = vector.shape_cast %26 : vector<256xf32> to vector<1x256xf32>
    %28 = math.exp %27 : vector<1x256xf32>
    %29 = tpu.reciprocal %17 {approx = true} : vector<1x256xf32> -> vector<1x256xf32>
    %30 = vector.broadcast %29 : vector<1x256xf32> to vector<4x256xf32>
    %31 = arith.mulf %15, %30 : vector<4x256xf32>
    %32 = arith.mulf %31, %31 : vector<4x256xf32>
    %33 = arith.mulf %32, %32 : vector<4x256xf32>
    %cst_9 = arith.constant 0.301507533 : f32
    %34 = vector.broadcast %cst_9 : f32 to vector<4x256xf32>
    %35 = arith.mulf %33, %34 : vector<4x256xf32>
    %cst_10 = arith.constant 0.698492467 : f32
    %36 = vector.broadcast %cst_10 : f32 to vector<4x256xf32>
    %37 = arith.addf %35, %36 : vector<4x256xf32>
    %38 = arith.mulf %20, %37 : vector<4x256xf32>
    %cst_11 = arith.constant dense<0.000000e+00> : vector<256xf32>
    %39 = vector.multi_reduction <add>, %38, %cst_11 [0] : vector<4x256xf32> to vector<256xf32>
    %40 = vector.shape_cast %39 : vector<256xf32> to vector<1x256xf32>
    %41 = arith.mulf %28, %28 : vector<1x256xf32>
    %42 = arith.mulf %41, %41 : vector<1x256xf32>
    %cst_12 = arith.constant 0.301507533 : f32
    %43 = vector.broadcast %cst_12 : f32 to vector<1x256xf32>
    %44 = arith.mulf %43, %42 : vector<1x256xf32>
    %cst_13 = arith.constant 0.698492467 : f32
    %45 = vector.broadcast %cst_13 : f32 to vector<1x256xf32>
    %46 = arith.addf %44, %45 : vector<1x256xf32>
    %47 = arith.mulf %27, %46 : vector<1x256xf32>
    %48 = arith.subf %40, %47 : vector<1x256xf32>
    %cst_14 = arith.constant 2.500000e-02 : f32
    %49 = vector.broadcast %cst_14 : f32 to vector<1x256xf32>
    %50 = arith.mulf %49, %48 : vector<1x256xf32>
    %cst_15 = arith.constant 1.000000e+00 : f32
    %51 = vector.broadcast %cst_15 : f32 to vector<1x256xf32>
    %52 = arith.mulf %27, %51 : vector<1x256xf32>
    %cst_16 = arith.constant 9.250000e-01 : f32
    %53 = vector.broadcast %cst_16 : f32 to vector<1x256xf32>
    %54 = arith.mulf %53, %52 : vector<1x256xf32>
    %55 = arith.addf %50, %54 : vector<1x256xf32>
    %cst_17 = arith.constant 0.000000e+00 : f32
    %56 = vector.broadcast %cst_17 : f32 to vector<1x256xf32>
    %57 = arith.subf %56, %55 : vector<1x256xf32>
    %c0_18 = arith.constant 0 : index
    %c0_19 = arith.constant 0 : index
    %58 = vector.load %arg7[%c0_18, %c0_19] : memref<1x256xf32, #tpu.memory_space<vmem>>, vector<1x256xf32>
    %59 = arith.mulf %57, %10 : vector<1x256xf32>
    %60 = arith.addf %58, %59 : vector<1x256xf32>
    %c0_20 = arith.constant 0 : index
    %c0_21 = arith.constant 0 : index
    %61 = vector.load %arg7[%c0_20, %c0_21] : memref<1x256xf32, #tpu.memory_space<vmem>>, vector<1x256xf32>
    tpu.vector_store %arg7[%c0_20, %c0_21], %60 {strides = array<i32>} : memref<1x256xf32, #tpu.memory_space<vmem>>, vector<1x256xf32>,
    %c0_22 = arith.constant 0 : index
    %c0_23 = arith.constant 0 : index
    %62 = vector.load %arg8[%c0_22, %c0_23] : memref<1x256xf32, #tpu.memory_space<vmem>>, vector<1x256xf32>
    %63 = arith.addf %62, %10 : vector<1x256xf32>
    %c0_24 = arith.constant 0 : index
    %c0_25 = arith.constant 0 : index
    %64 = vector.load %arg8[%c0_24, %c0_25] : memref<1x256xf32, #tpu.memory_space<vmem>>, vector<1x256xf32>
    tpu.vector_store %arg8[%c0_24, %c0_25], %63 {strides = array<i32>} : memref<1x256xf32, #tpu.memory_space<vmem>>, vector<1x256xf32>,
    %c0_i32_26 = arith.constant 0 : i32
    %65 = arith.cmpi eq, %arg2, %c0_i32_26 : i32
    %66 = arith.extui %65 : i1 to i32
    %c0_i32_27 = arith.constant 0 : i32
    %67 = arith.cmpi ne, %66, %c0_i32_27 : i32
    scf.if %67 {
      %c0_28 = arith.constant 0 : index
      %c0_29 = arith.constant 0 : index
      %68 = vector.load %arg7[%c0_28, %c0_29] : memref<1x256xf32, #tpu.memory_space<vmem>>, vector<1x256xf32>
      %69 = vector.shape_cast %68 : vector<1x256xf32> to vector<1x1x256xf32>
      %cst_30 = arith.constant dense<0.000000e+00> : vector<1xf32>
      %70 = vector.multi_reduction <add>, %69, %cst_30 [1, 2] : vector<1x1x256xf32> to vector<1xf32>
      %71 = vector.shape_cast %70 : vector<1xf32> to vector<1x1x1xf32>
      %72 = vector.extract %71[0, 0, 0] : f32 from vector<1x1x1xf32>
      %73 = vector.broadcast %72 : f32 to vector<1x1x1xf32>
      %c0_31 = arith.constant 0 : index
      %c0_32 = arith.constant 0 : index
      %c0_33 = arith.constant 0 : index
      %74 = vector.load %arg5[%c0_31, %c0_32, %c0_33] : memref<1x1x1xf32, #tpu.memory_space<vmem>>, vector<1x1x1xf32>
      tpu.vector_store %arg5[%c0_31, %c0_32, %c0_33], %73 {strides = array<i32>} : memref<1x1x1xf32, #tpu.memory_space<vmem>>, vector<1x1x1xf32>,
      %c0_34 = arith.constant 0 : index
      %c0_35 = arith.constant 0 : index
      %75 = vector.load %arg8[%c0_34, %c0_35] : memref<1x256xf32, #tpu.memory_space<vmem>>, vector<1x256xf32>
      %76 = vector.shape_cast %75 : vector<1x256xf32> to vector<1x1x256xf32>
      %cst_36 = arith.constant dense<0.000000e+00> : vector<1xf32>
      %77 = vector.multi_reduction <add>, %76, %cst_36 [1, 2] : vector<1x1x256xf32> to vector<1xf32>
      %78 = vector.shape_cast %77 : vector<1xf32> to vector<1x1x1xf32>
      %79 = vector.extract %78[0, 0, 0] : f32 from vector<1x1x1xf32>
      %80 = vector.broadcast %79 : f32 to vector<1x1x1xf32>
      %c0_37 = arith.constant 0 : index
      %c0_38 = arith.constant 0 : index
      %c0_39 = arith.constant 0 : index
      %81 = vector.load %arg6[%c0_37, %c0_38, %c0_39] : memref<1x1x1xf32, #tpu.memory_space<vmem>>, vector<1x1x1xf32>
      tpu.vector_store %arg6[%c0_37, %c0_38, %c0_39], %80 {strides = array<i32>} : memref<1x1x1xf32, #tpu.memory_space<vmem>>, vector<1x1x1xf32>,
    } else {
    }
    return
  }
  func.func @transform_0(%arg0: i32, %arg1: i32, %arg2: i32) -> (i32, i32, i32) {
    %c1_i32 = arith.constant 1 : i32
    %0 = arith.muli %arg1, %c1_i32 : i32
    %1 = arith.addi %0, %arg2 : i32
    %c0_i32 = arith.constant 0 : i32
    %c0_i32_0 = arith.constant 0 : i32
    return %arg0, %c0_i32, %1 : i32, i32, i32
  }
  func.func @transform_1(%arg0: i32, %arg1: i32, %arg2: i32) -> (i32, i32, i32) {
    %c1_i32 = arith.constant 1 : i32
    %0 = arith.muli %arg1, %c1_i32 : i32
    %1 = arith.addi %0, %arg2 : i32
    %c0_i32 = arith.constant 0 : i32
    %c0_i32_0 = arith.constant 0 : i32
    return %arg0, %c0_i32, %1 : i32, i32, i32
  }
  func.func @transform_2(%arg0: i32, %arg1: i32, %arg2: i32) -> (i32, i32, i32) {
    %c1_i32 = arith.constant 1 : i32
    %0 = arith.muli %arg0, %c1_i32 : i32
    %1 = arith.addi %0, %arg1 : i32
    %c0_i32 = arith.constant 0 : i32
    %c0_i32_0 = arith.constant 0 : i32
    %c0_i32_1 = arith.constant 0 : i32
    return %1, %c0_i32, %c0_i32_0 : i32, i32, i32
  }
  func.func @transform_3(%arg0: i32, %arg1: i32, %arg2: i32) -> (i32, i32, i32) {
    %c1_i32 = arith.constant 1 : i32
    %0 = arith.muli %arg0, %c1_i32 : i32
    %1 = arith.addi %0, %arg1 : i32
    %c0_i32 = arith.constant 0 : i32
    %c0_i32_0 = arith.constant 0 : i32
    %c0_i32_1 = arith.constant 0 : i32
    return %1, %c0_i32, %c0_i32_0 : i32, i32, i32
  }
}

</mosaic_0001>

<llo_original>
// kernel: cyclical_focal_loss.1
$region0: #{cyclical_focal_loss.1}
  #allocation0 [shape = 'u32[]', space=smem, size = 0x4, offset = 0x4, fixed_abs, tag = 'smem constant byte address 0x4 - core index']
  #allocation1 [shape = 'u32[144,128]{1,0:T(1,128)}', space=vmem, size = 0x12000, scoped, tag = 'internal scratch']
  #allocation2 [shape = 'f32[1,256]{1,0:T(1,128)}', space=vmem, size = 0x400, scoped, tag = 'scratch operand']
  #allocation3 [shape = 'f32[1,256]{1,0:T(1,128)}', space=vmem, size = 0x400, scoped, tag = 'scratch operand']
  %s0 = inlined_call_operand.vmem [shape: f32[2,4,256], index: 0, kind: input, shape index: {}]
  %s1 = inlined_call_operand.vmem [shape: s32[2,1,256], index: 1, kind: input, shape index: {}]
  %s2 = inlined_call_operand.vmem [shape: f32[2,1,1], index: 2, kind: output, shape index: {0}]
  %s3 = inlined_call_operand.vmem [shape: f32[2,1,1], index: 3, kind: output, shape index: {1}]
  %4 = xla_tuple %s2, %s3
  %s5 = sld [smem:[#allocation0]]
  $region57: #{cyclical_focal_loss.1} parent=0
    _
  %s7 = ssub.s32 1, %s5
  %s8 = scalar_select 0, %s7, %s5
  loop: start=0, step=1, limit=4
  $region2: #{cyclical_focal_loss.1} parent=0 // loop_pre_header
    _
  $region3: #{cyclical_focal_loss.1} parent=0 // loop_header
    %s10 = sphi 0, %s14
    %p11 = scmp.ge.s32.totalorder %s10, 4
    %s17 = sphi 0, %s36
    %s18 = sphi 0, %s32
    %s19 = sphi 0, %s28
    %s20 = sphi 0, %s17
    %s21 = sphi 0, %s18
    %s22 = sphi 0, %s19
    %s23 = sphi 0, %s20
    %s24 = sphi 0, %s21
    %s25 = sphi 0, %s22
    %s43 = sphi 0, %s45
    %s46 = sphi 0, %s43
    %s47 = sphi 0, %s46
    %s63 = sphi 0, %s47
    %s73 = sphi 0, %s75
    %s76 = sphi 0, %s73
    %s77 = sphi 0, %s76
    %s93 = sphi 0, %s77
    %s101 = sphi 0, %s103
    %s104 = sphi 0, %s101
    %s105 = sphi 0, %s104
    %s121 = sphi 0, %s105
    %s129 = sphi 0, %s131
    %s132 = sphi 0, %s129
    %s133 = sphi 0, %s132
    %s149 = sphi 0, %s133
  $region4: #{cyclical_focal_loss.1} parent=0 // loop_header_branch
    %13 = sbr.rel (%p11) target = $region8
  $region5: #{cyclical_focal_loss.1} parent=0 // loop_body
    %s15 = ssub.s32 %s10, 1
    %s16 = ssub.s32 %s10, 2
    %s26 = sadd.s32 1, %s19
    %p27 = scmp.ge.s32.totalorder %s26, 1
    %s28 = scalar_select %p27, 0, %s26
    %s29 = sadd.s32 1, %s18
    %s30 = scalar_select %p27, %s29, %s18
    %p31 = scmp.ge.s32.totalorder %s30, 1
    %s32 = scalar_select %p31, 0, %s30
    %s33 = sadd.s32 1, %s17
    %s34 = scalar_select %p31, %s33, %s17
    %p35 = scmp.ge.s32.totalorder %s34, 2
    %s36 = scalar_select %p35, 0, %s34
    %s37 = sadd.s32 %s18, %s19
    %s38 = sadd.s32 %s32, %s28
    %s39 = ssub.s32 %s17, %s36
    %s40 = ssub.s32 %s37, %s38
    %s41 = sor.u32 %s39, %s40
    %p42 = scmp.eq.s32.totalorder %s41, 0
    %s44 = sadd.s32 %s43, 1
    %s45 = scalar_select %p42, %s43, %s44
    %p48 = pneg %p42
    %p49 = scmp.eq.s32.totalorder %s10, 1
    %p50 = por %p48, %p49
    %p51 = scmp.ne.s32.totalorder %s43, %s46
    %p52 = scmp.eq.s32.totalorder %s10, 0
    %p53 = por %p51, %p52
    %p54 = scmp.ne.s32.totalorder %s43, %s46
    %p55 = scmp.eq.s32.totalorder %s15, 1
    %p56 = por %p54, %p55
    %p57 = scmp.ne.s32.totalorder %s46, %s47
    %p58 = scmp.eq.s32.totalorder %s15, 0
    %p59 = por %p57, %p58
    %p60 = scmp.ne.s32.totalorder %s46, %s47
    %p61 = scmp.eq.s32.totalorder %s16, 1
    %p62 = por %p60, %p61
    %p64 = scmp.ne.s32.totalorder %s47, %s63
    %p65 = scmp.eq.s32.totalorder %s16, 0
    %p66 = por %p64, %p65
    %s67 = sadd.s32 %s18, %s19
    %s68 = sadd.s32 %s32, %s28
    %s69 = ssub.s32 %s17, %s36
    %s70 = ssub.s32 %s67, %s68
    %s71 = sor.u32 %s69, %s70
    %p72 = scmp.eq.s32.totalorder %s71, 0
    %s74 = sadd.s32 %s73, 1
    %s75 = scalar_select %p72, %s73, %s74
    %p78 = pneg %p72
    %p79 = scmp.eq.s32.totalorder %s10, 1
    %p80 = por %p78, %p79
    %p81 = scmp.ne.s32.totalorder %s73, %s76
    %p82 = scmp.eq.s32.totalorder %s10, 0
    %p83 = por %p81, %p82
    %p84 = scmp.ne.s32.totalorder %s73, %s76
    %p85 = scmp.eq.s32.totalorder %s15, 1
    %p86 = por %p84, %p85
    %p87 = scmp.ne.s32.totalorder %s76, %s77
    %p88 = scmp.eq.s32.totalorder %s15, 0
    %p89 = por %p87, %p88
    %p90 = scmp.ne.s32.totalorder %s76, %s77
    %p91 = scmp.eq.s32.totalorder %s16, 1
    %p92 = por %p90, %p91
    %p94 = scmp.ne.s32.totalorder %s77, %s93
    %p95 = scmp.eq.s32.totalorder %s16, 0
    %p96 = por %p94, %p95
    %s97 = sadd.s32 %s17, %s18
    %s98 = sadd.s32 %s36, %s32
    %s99 = ssub.s32 %s97, %s98
    %p100 = scmp.eq.s32.totalorder %s99, 0
    %s102 = sadd.s32 %s101, 1
    %s103 = scalar_select %p100, %s101, %s102
    %p106 = pneg %p100
    %p107 = scmp.eq.s32.totalorder %s10, 1
    %p108 = por %p106, %p107
    %p109 = scmp.ne.s32.totalorder %s101, %s104
    %p110 = scmp.eq.s32.totalorder %s10, 0
    %p111 = por %p109, %p110
    %p112 = scmp.ne.s32.totalorder %s101, %s104
    %p113 = scmp.eq.s32.totalorder %s15, 1
    %p114 = por %p112, %p113
    %p115 = scmp.ne.s32.totalorder %s104, %s105
    %p116 = scmp.eq.s32.totalorder %s15, 0
    %p117 = por %p115, %p116
    %p118 = scmp.ne.s32.totalorder %s104, %s105
    %p119 = scmp.eq.s32.totalorder %s16, 1
    %p120 = por %p118, %p119
    %p122 = scmp.ne.s32.totalorder %s105, %s121
    %p123 = scmp.eq.s32.totalorder %s16, 0
    %p124 = por %p122, %p123
    %s125 = sadd.s32 %s17, %s18
    %s126 = sadd.s32 %s36, %s32
    %s127 = ssub.s32 %s125, %s126
    %p128 = scmp.eq.s32.totalorder %s127, 0
    %s130 = sadd.s32 %s129, 1
    %s131 = scalar_select %p128, %s129, %s130
    %p134 = pneg %p128
    %p135 = scmp.eq.s32.totalorder %s10, 1
    %p136 = por %p134, %p135
    %p137 = scmp.ne.s32.totalorder %s129, %s132
    %p138 = scmp.eq.s32.totalorder %s10, 0
    %p139 = por %p137, %p138
    %p140 = scmp.ne.s32.totalorder %s129, %s132
    %p141 = scmp.eq.s32.totalorder %s15, 1
    %p142 = por %p140, %p141
    %p143 = scmp.ne.s32.totalorder %s132, %s133
    %p144 = scmp.eq.s32.totalorder %s15, 0
    %p145 = por %p143, %p144
    %p146 = scmp.ne.s32.totalorder %s132, %s133
    %p147 = scmp.eq.s32.totalorder %s16, 1
    %p148 = por %p146, %p147
    %p150 = scmp.ne.s32.totalorder %s133, %s149
    %p151 = scmp.eq.s32.totalorder %s16, 0
    %p152 = por %p150, %p151
    %p153 = scmp.le.s32.totalorder 1, %s10
    %p154 = scmp.lt.s32.totalorder %s10, 3
    %p155 = pnand %p153, %p154
    %p156 = pneg %p155
    // Predicated region
    $region9: #{cyclical_focal_loss.1} parent=5 // pred_check
      _
    $region10: #{cyclical_focal_loss.1} parent=5 // pred_check_branch
      %158 = sbr.rel (%p155) target = $region12
    $region11: #{cyclical_focal_loss.1} parent=5 // pred_region
      %s159 = ssub.s32 %s10, 1
    $region12: #{cyclical_focal_loss.1} parent=5 // pred_fallthru
      _
    %p160 = scmp.lt.s32.totalorder %s10, 2
    // Predicated region
    $region13: #{cyclical_focal_loss.1} parent=5 // pred_check
      %p161 = pneg %p160
    $region14: #{cyclical_focal_loss.1} parent=5 // pred_check_branch
      %163 = sbr.rel (%p161) target = $region16
    $region15: #{cyclical_focal_loss.1} parent=5 // pred_region
      // Predicated region
      $region17: #{cyclical_focal_loss.1} parent=15 // pred_check
        %p164 = pneg %p53
      $region18: #{cyclical_focal_loss.1} parent=15 // pred_check_branch
        %166 = sbr.rel (%p164) target = $region20
      $region19: #{cyclical_focal_loss.1} parent=15 // pred_region
        %s167 = sadd.s32 %s18, %s19
        %s168 = smul.u32 2, %s167
        %p169 = scmp.lt.s32.totalorder %s17, 1
        %s170 = scalar_select %p169, %s17, 1
        %p171 = scmp.lt.s32.totalorder %s168, 1
        %s172 = scalar_select %p171, %s168, 1
        %s173 = smul.addr %s170, 2
        %s174 = sadd.s32 %s172, %s173
        %s175 = smul.addr %s174, 4
        %s176 = scalar_lea.vmem %s0, %s175
        %s177 = sadd.s32 %s18, %s19
        %s178 = smul.u32 2, %s177
      $region20: #{cyclical_focal_loss.1} parent=15 // pred_fallthru
        _
      // Predicated region
      $region21: #{cyclical_focal_loss.1} parent=15 // pred_check
        %p179 = pneg %p83
      $region22: #{cyclical_focal_loss.1} parent=15 // pred_check_branch
        %181 = sbr.rel (%p179) target = $region24
      $region23: #{cyclical_focal_loss.1} parent=15 // pred_region
        %s182 = sadd.s32 %s18, %s19
        %s183 = smul.u32 2, %s182
        %p184 = scmp.lt.s32.totalorder %s17, 1
        %s185 = scalar_select %p184, %s17, 1
        %p186 = scmp.lt.s32.totalorder %s183, 1
        %s187 = scalar_select %p186, %s183, 1
        %s188 = smul.addr %s185, 2
        %s189 = sadd.s32 %s187, %s188
        %s190 = scalar_lea.vmem %s1, %s189
        %s191 = sadd.s32 %s18, %s19
        %s192 = smul.u32 2, %s191
      $region24: #{cyclical_focal_loss.1} parent=15 // pred_fallthru
        _
    $region16: #{cyclical_focal_loss.1} parent=5 // pred_fallthru
      _
    %p193 = scmp.le.s32.totalorder 1, %s10
    %p194 = scmp.lt.s32.totalorder %s10, 3
    %p195 = pnand %p193, %p194
    %p196 = pneg %p195
    // Predicated region
    $region25: #{cyclical_focal_loss.1} parent=5 // pred_check
      _
    $region26: #{cyclical_focal_loss.1} parent=5 // pred_check_branch
      %198 = sbr.rel (%p195) target = $region28
    $region27: #{cyclical_focal_loss.1} parent=5 // pred_region
      %s199 = ssub.s32 %s10, 1
      %s200 = sadd.s32 %s21, %s22
      %s201 = smul.u32 2, %s200
      %p202 = scmp.lt.s32.totalorder %s20, 1
      %s203 = scalar_select %p202, %s20, 1
      %p204 = scmp.lt.s32.totalorder %s201, 1
      %s205 = scalar_select %p204, %s201, 1
      %s206 = smul.addr %s203, 2
      %s207 = sadd.s32 %s205, %s206
      %s208 = smul.addr %s207, 4
      %s209 = scalar_lea.vmem %s0, %s208
      %p210 = pneg %p59
      %p211 = pneg %p56
      %s212 = sadd.s32 %s21, %s22
      %s213 = smul.u32 2, %s212
      %p214 = scmp.lt.s32.totalorder %s20, 1
      %s215 = scalar_select %p214, %s20, 1
      %p216 = scmp.lt.s32.totalorder %s213, 1
      %s217 = scalar_select %p216, %s213, 1
      %s218 = smul.addr %s215, 2
      %s219 = sadd.s32 %s217, %s218
      %s220 = scalar_lea.vmem %s1, %s219
      %p221 = pneg %p89
      %p222 = pneg %p86
      %p223 = pneg %p117
      %p224 = pneg %p114
      %s225 = sadd.s32 %s20, %s21
      %p226 = scmp.lt.s32.totalorder %s225, 1
      %s227 = scalar_select %p226, %s225, 1
      %s228 = scalar_lea.vmem %s2, %s227
      %p229 = pneg %p145
      %p230 = pneg %p142
      %s231 = sadd.s32 %s20, %s21
      %p232 = scmp.lt.s32.totalorder %s231, 1
      %s233 = scalar_select %p232, %s231, 1
      %s234 = scalar_lea.vmem %s3, %s233
      %s235 = sadd.s32 %s21, %s22
      %s236 = smul.u32 2, %s235
      %p237 = scmp.lt.s32.totalorder %s20, 1
      %s238 = scalar_select %p237, %s20, 1
      %p239 = scmp.lt.s32.totalorder %s236, 1
      %s240 = scalar_select %p239, %s236, 1
      %s241 = smul.addr %s238, 2
      %s242 = sadd.s32 %s240, %s241
      %s243 = smul.addr %s242, 4
      %s244 = scalar_lea.vmem %s0, %s243
      %s245 = sadd.s32 %s21, %s22
      %s246 = smul.u32 2, %s245
      %s247 = sadd.s32 %s21, %s22
      %s248 = smul.u32 2, %s247
      %p249 = scmp.lt.s32.totalorder %s20, 1
      %s250 = scalar_select %p249, %s20, 1
      %p251 = scmp.lt.s32.totalorder %s248, 1
      %s252 = scalar_select %p251, %s248, 1
      %s253 = smul.addr %s250, 2
      %s254 = sadd.s32 %s252, %s253
      %s255 = scalar_lea.vmem %s1, %s254
      %s256 = sadd.s32 %s21, %s22
      %s257 = smul.u32 2, %s256
      %s258 = sadd.s32 %s20, %s21
      %p259 = scmp.lt.s32.totalorder %s258, 1
      %s260 = scalar_select %p259, %s258, 1
      %s261 = scalar_lea.vmem %s2, %s260
      %s262 = sadd.s32 %s20, %s21
      %s263 = sadd.s32 %s20, %s21
      %p264 = scmp.lt.s32.totalorder %s263, 1
      %s265 = scalar_select %p264, %s263, 1
      %s266 = scalar_lea.vmem %s3, %s265
      %s267 = sadd.s32 %s20, %s21
      %p268 = scmp.eq.s32.totalorder %s22, 0
      // Predicated region
      $region29: #{cyclical_focal_loss.1} parent=27 // pred_check
        %p269 = pneg %p268
      $region30: #{cyclical_focal_loss.1} parent=27 // pred_check_branch
        %271 = sbr.rel (%p269) target = $region32
      $region31: #{cyclical_focal_loss.1} parent=27 // pred_region
        %v272 = vlaneseq
        %vm273 = vcmp.ge.s32.totalorder %v272, 0
        %vm274 = vcmp.lt.s32.totalorder %v272, 256
        %vm275 = vmand %vm273, %vm274
        %276 = vst.msk [vmem:[#allocation2] sm:$0x3] %vm275, 0.0
        %277 = vst.msk [vmem:[#allocation3] sm:$0x3] %vm275, 0.0
      $region32: #{cyclical_focal_loss.1} parent=27 // pred_fallthru
        _
      %v278 = vld [vmem:[%s244] sm:$0xff]
      %v279 = vld [vmem:[%s255] sm:$0x3]
      %vm280 = vcmp.ne.s32.totalorder %v279, 4294967295
      %v281 = vsel %vm280, 1, 0
      %v282 = vcvt.s32.f32 %v281
      %v284 = vcombine.high %v278, %v278
      %vm286 = vcmask 1043456
      %v287 = vsel %vm286, %v278, -inf
      %v288 = vrot.slane %v287, 4
      %v289 = vmax.f32 %v287, %v288
      %v290 = vrot.slane %v289, 2
      %v291 = vmax.f32 %v289, %v290
      %v292 = vrot.slane %v291, 1
      %v293 = vmax.f32 %v291, %v292
      %v294 = vsel %vm286, %v284, -inf
      %v295 = vrot.slane %v294, 4
      %v296 = vmax.f32 %v294, %v295
      %v297 = vrot.slane %v296, 2
      %v298 = vmax.f32 %v296, %v297
      %v299 = vrot.slane %v298, 1
      %v300 = vmax.f32 %v298, %v299
      %v303 = vcombine.low %v293, %v300
      %v305 = vsub.f32 %v278, %v303
      %v306 = vmul.f32 %v305, 1.442695
      %v307 = vpow.pop %v306
      %v309 = vcombine.high %v307, %v307
      %v311 = vsel %vm286, %v307, 0.0
      %v312 = vrot.slane %v311, 4
      %v313 = vadd.f32 %v311, %v312
      %v314 = vrot.slane %v313, 2
      %v315 = vadd.f32 %v313, %v314
      %v316 = vrot.slane %v315, 1
      %v317 = vadd.f32 %v315, %v316
      %v318 = vsel %vm286, %v309, 0.0
      %v319 = vrot.slane %v318, 4
      %v320 = vadd.f32 %v318, %v319
      %v321 = vrot.slane %v320, 2
      %v322 = vadd.f32 %v320, %v321
      %v323 = vrot.slane %v322, 1
      %v324 = vadd.f32 %v322, %v323
      %v325 = vlog2.pop %v317
      %v326 = vmul.f32 %v325, 0.6931472
      %v327 = vlog2.pop %v324
      %v328 = vmul.f32 %v327, 0.6931472
      %v331 = vcombine.low %v326, %v328
      %v333 = vsub.f32 %v305, %v331
      %v334 = vlaneseq
      %v335 = vshrl.u32 %v334, 7
      %v336 = vlaneseq
      %v337 = vshrl.u32 %v336, 7
      %v338 = vsub.s32 0, %v337
      %v339 = vrot.slane %v279, %v338
      %v340 = vlaneseq
      %v341 = vshrl.u32 %v340, 7
      %v342 = vsub.s32 1, %v341
      %v343 = vrot.slane %v279, %v342
      %vm344 = vcmp.eq.s32.totalorder %v335, %v339
      %vm345 = vcmp.eq.s32.totalorder %v335, %v343
      %v347 = vcombine.high %v333, %v333
      %v349 = vsel %vm344, %v333, 0.0
      %v350 = vsel %vm345, %v347, 0.0
      %v351 = vsel %vm286, %v349, 0.0
      %v352 = vrot.slane %v351, 4
      %v353 = vadd.f32 %v351, %v352
      %v354 = vrot.slane %v353, 2
      %v355 = vadd.f32 %v353, %v354
      %v356 = vrot.slane %v355, 1
      %v357 = vadd.f32 %v355, %v356
      %v358 = vsel %vm286, %v350, 0.0
      %v359 = vrot.slane %v358, 4
      %v360 = vadd.f32 %v358, %v359
      %v361 = vrot.slane %v360, 2
      %v362 = vadd.f32 %v360, %v361
      %v363 = vrot.slane %v362, 1
      %v364 = vadd.f32 %v362, %v363
      %v365 = vmul.f32 %v357, 1.442695
      %v366 = vpow.pop %v365
      %v367 = vmul.f32 %v364, 1.442695
      %v368 = vpow.pop %v367
      %v369 = vrcp.pop %v317
      %v370 = vrcp.pop %v324
      %v373 = vcombine.low %v369, %v370
      %v375 = vmul.f32 %v307, %v373
      %v376 = vmul.f32 %v375, %v375
      %v377 = vmul.f32 %v376, %v376
      %v378 = vmul.f32 %v377, 0.30150753
      %v379 = vadd.f32 %v378, 0.69849247
      %v380 = vmul.f32 %v333, %v379
      %v382 = vcombine.high %v380, %v380
      %v384 = vsel %vm286, %v380, 0.0
      %v385 = vrot.slane %v384, 4
      %v386 = vadd.f32 %v384, %v385
      %v387 = vrot.slane %v386, 2
      %v388 = vadd.f32 %v386, %v387
      %v389 = vrot.slane %v388, 1
      %v390 = vadd.f32 %v388, %v389
      %v391 = vsel %vm286, %v382, 0.0
      %v392 = vrot.slane %v391, 4
      %v393 = vadd.f32 %v391, %v392
      %v394 = vrot.slane %v393, 2
      %v395 = vadd.f32 %v393, %v394
      %v396 = vrot.slane %v395, 1
      %v397 = vadd.f32 %v395, %v396
      %v398 = vmul.f32 %v366, %v366
      %v399 = vmul.f32 %v368, %v368
      %v400 = vmul.f32 %v398, %v398
      %v401 = vmul.f32 %v399, %v399
      %v402 = vmul.f32 %v400, 0.30150753
      %v403 = vmul.f32 %v401, 0.30150753
      %v404 = vadd.f32 %v402, 0.69849247
      %v405 = vadd.f32 %v403, 0.69849247
      %v406 = vmul.f32 %v357, %v404
      %v407 = vmul.f32 %v364, %v405
      %v408 = vsub.f32 %v390, %v406
      %v409 = vsub.f32 %v397, %v407
      %v410 = vmul.f32 %v408, 0.025
      %v411 = vmul.f32 %v409, 0.025
      %v412 = vmul.f32 %v357, 0.925
      %v413 = vmul.f32 %v364, 0.925
      %v414 = vadd.f32 %v410, %v412
      %v415 = vadd.f32 %v411, %v413
      %v416 = vsub.f32 0.0, %v414
      %v417 = vsub.f32 0.0, %v415
      %v418 = vld [vmem:[#allocation2] sm:$0x3]
      %v420 = vlaneseq
      %v421 = vshrl.u32 %v420, 7
      %v422 = vsub.s32 0, %v421
      %v423 = vrot.slane %v282, %v422
      %v424 = vlaneseq
      %v425 = vshrl.u32 %v424, 7
      %v426 = vsub.s32 1, %v425
      %v427 = vrot.slane %v282, %v426
      %v430 = vmul.f32 %v416, %v423
      %v431 = vmul.f32 %v417, %v427
      %v434 = vcombine.low %v430, %v431
      %v436 = vunpack.c.l.s4 1966171168
      %v437 = vunpack.c.0.s8 %v436
      %v438 = vlaneseq
      %v439 = vshrl.u32 %v438, 7
      %v440 = vsub.s32 %v437, %v439
      %v441 = vrot.slane %v434, %v440
      %v443 = vunpack.c.l.s4 1966171168
      %v444 = vunpack.c.0.s8 %v443
      %v445 = vlaneseq
      %v446 = vshrl.u32 %v445, 7
      %v447 = vsub.s32 %v444, %v446
      %v448 = vrot.slane %v441, %v447
      %v450 = vadd.f32 %v418, %v448
      %v451 = vlaneseq
      %vm452 = vcmp.ge.s32.totalorder %v451, 0
      %vm453 = vcmp.lt.s32.totalorder %v451, 256
      %vm454 = vmand %vm452, %vm453
      %455 = vst.msk [vmem:[#allocation2] sm:$0x3] %vm454, %v450
      %v456 = vld [vmem:[#allocation3] sm:$0x3]
      %v457 = vadd.f32 %v456, %v282
      %458 = vst.msk [vmem:[#allocation3] sm:$0x3] %vm454, %v457
      // Predicated region
      $region33: #{cyclical_focal_loss.1} parent=27 // pred_check
        %p459 = pneg %p268
      $region34: #{cyclical_focal_loss.1} parent=27 // pred_check_branch
        %461 = sbr.rel (%p459) target = $region36
      $region35: #{cyclical_focal_loss.1} parent=27 // pred_region
        %v462 = vld [vmem:[#allocation2] sm:$0x3]
        %v464 = vlaneseq
        %v465 = vshrl.u32 %v464, 7
        %v466 = vsub.s32 0, %v465
        %v467 = vrot.slane %v462, %v466
        %v468 = vlaneseq
        %v469 = vshrl.u32 %v468, 7
        %v470 = vsub.s32 1, %v469
        %v471 = vrot.slane %v462, %v470
        %vm474 = vcmask 1040384
        %v475 = vsel %vm474, %v467, 0.0
        %v476 = vsel %vm474, %v471, 0.0
        %v477 = vadd.f32 %v475, %v476
        %478 = vadd.xlane.f32.xlu0 %v477
        %v479 = vpop.xlane.xlu0 %478
        %v480 = vrot.slane %v479, 4
        %v481 = vadd.f32 %v479, %v480
        %v482 = vrot.slane %v481, 2
        %v483 = vadd.f32 %v481, %v482
        %v484 = vrot.slane %v483, 1
        %v485 = vadd.f32 %v483, %v484
        %s486 = vtos %v485
        %v487 = vstv %s486
        %vm488 = vcmask 0
        %489 = vst.msk [vmem:[%s261] sm:$0x1] %vm488, %v487
        %v490 = vld [vmem:[#allocation3] sm:$0x3]
        %v492 = vlaneseq
        %v493 = vshrl.u32 %v492, 7
        %v494 = vsub.s32 0, %v493
        %v495 = vrot.slane %v490, %v494
        %v496 = vlaneseq
        %v497 = vshrl.u32 %v496, 7
        %v498 = vsub.s32 1, %v497
        %v499 = vrot.slane %v490, %v498
        %v502 = vsel %vm474, %v495, 0.0
        %v503 = vsel %vm474, %v499, 0.0
        %v504 = vadd.f32 %v502, %v503
        %505 = vadd.xlane.f32.xlu0 %v504
        %v506 = vpop.xlane.xlu0 %505
        %v507 = vrot.slane %v506, 4
        %v508 = vadd.f32 %v506, %v507
        %v509 = vrot.slane %v508, 2
        %v510 = vadd.f32 %v508, %v509
        %v511 = vrot.slane %v510, 1
        %v512 = vadd.f32 %v510, %v511
        %s513 = vtos %v512
        %v514 = vstv %s513
        %515 = vst.msk [vmem:[%s266] sm:$0x1] %vm488, %v514
      $region36: #{cyclical_focal_loss.1} parent=27 // pred_fallthru
        _
      %s516 = sadd.s32 %s20, %s21
      %p517 = scmp.lt.s32.totalorder %s516, 1
      %s518 = scalar_select %p517, %s516, 1
      %s519 = scalar_lea.vmem %s2, %s518
      %s520 = sadd.s32 %s20, %s21
      %p521 = scmp.lt.s32.totalorder %s520, 1
      %s522 = scalar_select %p521, %s520, 1
      %s523 = scalar_lea.vmem %s3, %s522
      // Predicated region
      $region37: #{cyclical_focal_loss.1} parent=27 // pred_check
        %p524 = pneg %p114
      $region38: #{cyclical_focal_loss.1} parent=27 // pred_check_branch
        %526 = sbr.rel (%p524) target = $region40
      $region39: #{cyclical_focal_loss.1} parent=27 // pred_region
        %s527 = sadd.s32 %s20, %s21
      $region40: #{cyclical_focal_loss.1} parent=27 // pred_fallthru
        _
      // Predicated region
      $region41: #{cyclical_focal_loss.1} parent=27 // pred_check
        %p528 = pneg %p142
      $region42: #{cyclical_focal_loss.1} parent=27 // pred_check_branch
        %530 = sbr.rel (%p528) target = $region44
      $region43: #{cyclical_focal_loss.1} parent=27 // pred_region
        %s531 = sadd.s32 %s20, %s21
      $region44: #{cyclical_focal_loss.1} parent=27 // pred_fallthru
        _
    $region28: #{cyclical_focal_loss.1} parent=5 // pred_fallthru
      _
    %p532 = scmp.le.s32.totalorder 2, %s10
    // Predicated region
    $region45: #{cyclical_focal_loss.1} parent=5 // pred_check
      %p533 = pneg %p532
    $region46: #{cyclical_focal_loss.1} parent=5 // pred_check_branch
      %535 = sbr.rel (%p533) target = $region48
    $region47: #{cyclical_focal_loss.1} parent=5 // pred_region
      %s536 = ssub.s32 %s10, 2
      // Predicated region
      $region49: #{cyclical_focal_loss.1} parent=47 // pred_check
        %p537 = pneg %p120
      $region50: #{cyclical_focal_loss.1} parent=47 // pred_check_branch
        %539 = sbr.rel (%p537) target = $region52
      $region51: #{cyclical_focal_loss.1} parent=47 // pred_region
        %s540 = sadd.s32 %s23, %s24
        %p541 = scmp.lt.s32.totalorder %s540, 1
        %s542 = scalar_select %p541, %s540, 1
        %s543 = scalar_lea.vmem %s2, %s542
      $region52: #{cyclical_focal_loss.1} parent=47 // pred_fallthru
        _
      // Predicated region
      $region53: #{cyclical_focal_loss.1} parent=47 // pred_check
        %p544 = pneg %p148
      $region54: #{cyclical_focal_loss.1} parent=47 // pred_check_branch
        %546 = sbr.rel (%p544) target = $region56
      $region55: #{cyclical_focal_loss.1} parent=47 // pred_region
        %s547 = sadd.s32 %s23, %s24
        %p548 = scmp.lt.s32.totalorder %s547, 1
        %s549 = scalar_select %p548, %s547, 1
        %s550 = scalar_lea.vmem %s3, %s549
      $region56: #{cyclical_focal_loss.1} parent=47 // pred_fallthru
        _
    $region48: #{cyclical_focal_loss.1} parent=5 // pred_fallthru
      _
  $region6: #{cyclical_focal_loss.1} parent=0 // loop_footer
    %s14 = sadd.s32 1, %s10
  $region7: #{cyclical_focal_loss.1} parent=0 // loop_footer_branch
    %9 = sbr.rel target = $region3
  $region8: #{cyclical_focal_loss.1} parent=0 // loop_exit
    _

</llo_original>
